<compile_context>
chip_gen: v5e
topology: v5e:2x2
jax: 0.10.0
libtpu: 0.0.40
codegen_flags: <defaults>
</compile_context>

<pallas_src>
import functools

import jax
import jax.numpy as jnp
import numpy as np
from jax.experimental import pallas as pl
from jax.experimental.pallas import tpu as pltpu


def _filter_layer_kernel(x_ref, w1_ref, b1_ref, w2_ref, b2_ref, o_ref, acc_ref,
                         *, inv_hw):
    """Grid = (batch_tiles, hw_tiles); hw axis is the (serial) reduction axis."""
    k = pl.program_id(1)

    # --- init accumulator for this batch tile --------------------------------
    @pl.when(k == 0)
    def _():
        acc_ref[...] = jnp.zeros_like(acc_ref)

    # --- running spatial sum (f32 accumulate, input may be bf16/f32) ---------
    x = x_ref[...].astype(jnp.float32)            # (bt, C, hw_t)
    acc_ref[...] += jnp.sum(x, axis=-1)           # (bt, C)

    # --- epilogue: mean -> FC1 -> ReLU -> FC2 -> sigmoid ----------------------
    @pl.when(k == pl.num_programs(1) - 1)
    def _():
        y = acc_ref[...] * inv_hw                 # divide once by the TRUE H*W
        h = jnp.dot(y, w1_ref[...], preferred_element_type=jnp.float32)
        h = jnp.maximum(h + b1_ref[...], 0.0)     # (bt, hidden)
        z = jnp.dot(h, w2_ref[...], preferred_element_type=jnp.float32)
        z = z + b2_ref[...]                       # (bt, out_planes)
        o_ref[...] = jax.nn.sigmoid(z).astype(o_ref.dtype)[:, None, :]


def filter_layer(x, w1, b1, w2, b2, *, max_hw_tile=2048,
                 vmem_x_budget_bytes=8 << 20):
    """x: (B, C, H, W).  Returns (B, out_planes, 1, 1) float32."""
    b, c, h, w = x.shape
    hw = h * w
    hidden = w1.shape[1]
    out_planes = w2.shape[1]

    # Flatten spatial; zero-pad the lane axis to a multiple of 128 (zeros do
    # not perturb the running sum; the mean divides by the true H*W later).
    x_flat = x.reshape(b, c, hw)
    hw_pad = pl.cdiv(hw, 128) * 128
    if hw_pad != hw:
        x_flat = jnp.pad(x_flat, ((0, 0), (0, 0), (0, hw_pad - hw)))

    # One batch row per grid step -> the 'parallel' axis can feed both v7x TCs.
    bt = 1
    dsize = x_flat.dtype.itemsize

    # Pick the HW tile from a conservative VMEM budget (x is double-buffered).
    hw_t = (vmem_x_budget_bytes // (2 * bt * c * dsize)) // 128 * 128
    hw_t = int(max(128, min(hw_t, max_hw_tile, hw_pad)))
    if hw_pad % hw_t != 0:  # make the padded extent divisible by the tile
        new_pad = pl.cdiv(hw_pad, hw_t) * hw_t
        x_flat = jnp.pad(x_flat, ((0, 0), (0, 0), (0, new_pad - hw_pad)))
        hw_pad = new_pad

    grid = (b // bt, hw_pad // hw_t)

    x_spec = pl.BlockSpec((bt, c, hw_t), lambda i, k: (i, 0, k))
    # Constant index_maps: weights/biases are DMA'd once and stay VMEM-resident.
    w1_spec = pl.BlockSpec(w1.shape, lambda i, k: (0, 0))
    b1_spec = pl.BlockSpec(b1.shape, lambda i, k: (0, 0))
    w2_spec = pl.BlockSpec(w2.shape, lambda i, k: (0, 0))
    b2_spec = pl.BlockSpec(b2.shape, lambda i, k: (0, 0))
    # 3-D output so the per-tile block equals the full trailing dims (1, out).
    out_spec = pl.BlockSpec((bt, 1, out_planes), lambda i, k: (i, 0, 0))

    param_bytes = sum(int(p.size) * p.dtype.itemsize for p in (w1, b1, w2, b2))
    cost = pl.CostEstimate(
        flops=int(b * c * hw + 2 * b * c * hidden + 2 * b * hidden * out_planes),
        transcendentals=int(b * out_planes),
        bytes_accessed=int(x_flat.size * dsize + param_bytes + b * out_planes * 4),
    )

    y = pl.pallas_call(
        functools.partial(_filter_layer_kernel, inv_hw=float(1.0 / hw)),
        out_shape=jax.ShapeDtypeStruct((b, 1, out_planes), jnp.float32),
        grid_spec=pltpu.PrefetchScalarGridSpec(
            num_scalar_prefetch=0,
            grid=grid,
            in_specs=[x_spec, w1_spec, b1_spec, w2_spec, b2_spec],
            out_specs=out_spec,
            scratch_shapes=[pltpu.VMEM((bt, c), jnp.float32)],
        ),
        compiler_params=pltpu.CompilerParams(
            dimension_semantics=("parallel", "arbitrary")),
        cost_estimate=cost,
    )(x_flat, w1, b1, w2, b2)

    return y.reshape(b, out_planes, 1, 1)


def make_params(key, in_planes, out_planes, reduction=16):
    """Synthetic params matching nn.Linear shapes.

    PyTorch Linear stores weight as (out, in) and computes x @ W.T + b; we
    store the already-transposed (in, out) matrices so the kernel does
    x @ W + b.  Biases are kept 2D (1, out) for TPU-friendly layout.
    """
    hidden = out_planes // reduction
    k1, k2, k3, k4 = jax.random.split(key, 4)
    bound1 = 1.0 / np.sqrt(in_planes)
    bound2 = 1.0 / np.sqrt(hidden)
    w1 = jax.random.uniform(k1, (in_planes, hidden), jnp.float32, -bound1, bound1)
    b1 = jax.random.uniform(k2, (1, hidden), jnp.float32, -bound1, bound1)
    w2 = jax.random.uniform(k3, (hidden, out_planes), jnp.float32, -bound2, bound2)
    b2 = jax.random.uniform(k4, (1, out_planes), jnp.float32, -bound2, bound2)
    return w1, b1, w2, b2


if __name__ == "__main__":
    # Small shapes consistent with the module (reduction=16 needs out>=16).
    B, C, H, W = 2, 32, 16, 16
    in_planes = C
    out_planes = 32
    reduction = 16

    key = jax.random.PRNGKey(0)
    kx, kp = jax.random.split(key)
    x = jax.random.normal(kx, (B, C, H, W), jnp.float32)
    w1, b1, w2, b2 = make_params(kp, in_planes, out_planes, reduction)

    # max_hw_tile=128 forces 2 HW tiles (H*W=256), exercising the pipelined
    # accumulation path; production calls can leave the default (auto-sized).
    out = filter_layer(x, w1, b1, w2, b2, max_hw_tile=128)
    out = jax.block_until_ready(out)

    # Pure-JAX reference.
    y_ref = jnp.mean(x, axis=(2, 3))
    h_ref = jnp.maximum(y_ref @ w1 + b1, 0.0)
    ref = jax.nn.sigmoid(h_ref @ w2 + b2).reshape(B, out_planes, 1, 1)
    np.testing.assert_allclose(np.asarray(out), np.asarray(ref),
                               rtol=1e-5, atol=1e-5)

    assert out.shape == (B, out_planes, 1, 1)
    print("KERNEL_OK")
</pallas_src>

<mosaic_0001>
module attributes {stable_mosaic.version = 11 : i64} {
  func.func @_filter_layer_kernel(%arg0: i32, %arg1: i32, %arg2: memref<1x32x128xf32, #tpu.memory_space<vmem>>, %arg3: memref<32x2xf32, #tpu.memory_space<vmem>>, %arg4: memref<1x2xf32, #tpu.memory_space<vmem>>, %arg5: memref<2x32xf32, #tpu.memory_space<vmem>>, %arg6: memref<1x32xf32, #tpu.memory_space<vmem>>, %arg7: memref<1x1x32xf32, #tpu.memory_space<vmem>>, %arg8: memref<1x32xf32, #tpu.memory_space<vmem>>) attributes {dimension_semantics = [#tpu.dimension_semantics<parallel>, #tpu.dimension_semantics<arbitrary>], iteration_bounds = array<i64: 2, 2>, scalar_prefetch = 0 : i64, scratch_operands = 1 : i64, tpu.core_type = #tpu.core_type<tc>, window_params = [{transform_indices = @transform_0, window_bounds = array<i64: 1, 32, 128>}, {pipeline_mode = #tpu.pipeline_mode<synchronous>, transform_indices = @transform_1, window_bounds = array<i64: 32, 2>}, {pipeline_mode = #tpu.pipeline_mode<synchronous>, transform_indices = @transform_2, window_bounds = array<i64: 1, 2>}, {pipeline_mode = #tpu.pipeline_mode<synchronous>, transform_indices = @transform_3, window_bounds = array<i64: 2, 32>}, {pipeline_mode = #tpu.pipeline_mode<synchronous>, transform_indices = @transform_4, window_bounds = array<i64: 1, 32>}, {transform_indices = @transform_5, window_bounds = array<i64: 1, 1, 32>}]} {
    %c0_i32 = arith.constant 0 : i32
    %0 = arith.cmpi eq, %arg1, %c0_i32 : i32
    %1 = arith.extui %0 : i1 to i32
    %c0_i32_0 = arith.constant 0 : i32
    %2 = arith.cmpi ne, %1, %c0_i32_0 : i32
    scf.if %2 {
      %cst_8 = arith.constant 0.000000e+00 : f32
      %11 = vector.broadcast %cst_8 : f32 to vector<1x32xf32>
      %c0_9 = arith.constant 0 : index
      %c0_10 = arith.constant 0 : index
      %12 = vector.load %arg8[%c0_9, %c0_10] : memref<1x32xf32, #tpu.memory_space<vmem>>, vector<1x32xf32>
      tpu.vector_store %arg8[%c0_9, %c0_10], %11 {strides = array<i32>} : memref<1x32xf32, #tpu.memory_space<vmem>>, vector<1x32xf32>,
    } else {
    }
    %c0 = arith.constant 0 : index
    %c0_1 = arith.constant 0 : index
    %c0_2 = arith.constant 0 : index
    %3 = vector.load %arg2[%c0, %c0_1, %c0_2] : memref<1x32x128xf32, #tpu.memory_space<vmem>>, vector<1x32x128xf32>
    %c0_3 = arith.constant 0 : index
    %c0_4 = arith.constant 0 : index
    %4 = vector.load %arg8[%c0_3, %c0_4] : memref<1x32xf32, #tpu.memory_space<vmem>>, vector<1x32xf32>
    %cst = arith.constant dense<0.000000e+00> : vector<1x32xf32>
    %5 = vector.multi_reduction <add>, %3, %cst [2] : vector<1x32x128xf32> to vector<1x32xf32>
    %6 = arith.addf %4, %5 : vector<1x32xf32>
    %c0_5 = arith.constant 0 : index
    %c0_6 = arith.constant 0 : index
    %7 = vector.load %arg8[%c0_5, %c0_6] : memref<1x32xf32, #tpu.memory_space<vmem>>, vector<1x32xf32>
    tpu.vector_store %arg8[%c0_5, %c0_6], %6 {strides = array<i32>} : memref<1x32xf32, #tpu.memory_space<vmem>>, vector<1x32xf32>,
    %c1_i32 = arith.constant 1 : i32
    %8 = arith.cmpi eq, %arg1, %c1_i32 : i32
    %9 = arith.extui %8 : i1 to i32
    %c0_i32_7 = arith.constant 0 : i32
    %10 = arith.cmpi ne, %9, %c0_i32_7 : i32
    scf.if %10 {
      %c0_8 = arith.constant 0 : index
      %c0_9 = arith.constant 0 : index
      %11 = vector.load %arg8[%c0_8, %c0_9] : memref<1x32xf32, #tpu.memory_space<vmem>>, vector<1x32xf32>
      %cst_10 = arith.constant 3.906250e-03 : f32
      %12 = vector.broadcast %cst_10 : f32 to vector<1x32xf32>
      %13 = arith.mulf %11, %12 : vector<1x32xf32>
      %c0_11 = arith.constant 0 : index
      %c0_12 = arith.constant 0 : index
      %14 = vector.load %arg3[%c0_11, %c0_12] : memref<32x2xf32, #tpu.memory_space<vmem>>, vector<32x2xf32>
      %cst_13 = arith.constant dense<0.000000e+00> : vector<1x2xf32>
      %15 = tpu.matmul %13, %14, %cst_13 {dimension_numbers = #tpu.dot_dimension_numbers<[1], [0], [0], [1], [0, 0, 1, 1], [], []>} : vector<1x32xf32>, vector<32x2xf32>, vector<1x2xf32> -> vector<1x2xf32>
      %c0_14 = arith.constant 0 : index
      %c0_15 = arith.constant 0 : index
      %16 = vector.load %arg4[%c0_14, %c0_15] : memref<1x2xf32, #tpu.memory_space<vmem>>, vector<1x2xf32>
      %17 = arith.addf %15, %16 : vector<1x2xf32>
      %cst_16 = arith.constant 0.000000e+00 : f32
      %18 = vector.broadcast %cst_16 : f32 to vector<1x2xf32>
      %19 = arith.maximumf %17, %18 : vector<1x2xf32>
      %c0_17 = arith.constant 0 : index
      %c0_18 = arith.constant 0 : index
      %20 = vector.load %arg5[%c0_17, %c0_18] : memref<2x32xf32, #tpu.memory_space<vmem>>, vector<2x32xf32>
      %cst_19 = arith.constant dense<0.000000e+00> : vector<1x32xf32>
      %21 = tpu.matmul %19, %20, %cst_19 {dimension_numbers = #tpu.dot_dimension_numbers<[1], [0], [0], [1], [0, 0, 1, 1], [], []>} : vector<1x2xf32>, vector<2x32xf32>, vector<1x32xf32> -> vector<1x32xf32>
      %c0_20 = arith.constant 0 : index
      %c0_21 = arith.constant 0 : index
      %22 = vector.load %arg6[%c0_20, %c0_21] : memref<1x32xf32, #tpu.memory_space<vmem>>, vector<1x32xf32>
      %23 = arith.addf %21, %22 : vector<1x32xf32>
      %24 = arith.negf %23 : vector<1x32xf32>
      %25 = math.exp %24 : vector<1x32xf32>
      %cst_22 = arith.constant 1.000000e+00 : f32
      %26 = vector.broadcast %cst_22 : f32 to vector<1x32xf32>
      %27 = arith.addf %26, %25 : vector<1x32xf32>
      %28 = arith.divf %26, %27 : vector<1x32xf32>
      %29 = vector.shape_cast %28 : vector<1x32xf32> to vector<1x1x32xf32>
      %c0_23 = arith.constant 0 : index
      %c0_24 = arith.constant 0 : index
      %c0_25 = arith.constant 0 : index
      %30 = vector.load %arg7[%c0_23, %c0_24, %c0_25] : memref<1x1x32xf32, #tpu.memory_space<vmem>>, vector<1x1x32xf32>
      tpu.vector_store %arg7[%c0_23, %c0_24, %c0_25], %29 {strides = array<i32>} : memref<1x1x32xf32, #tpu.memory_space<vmem>>, vector<1x1x32xf32>,
    } else {
    }
    return
  }
  func.func @transform_0(%arg0: i32, %arg1: i32) -> (i32, i32, i32) {
    %c0_i32 = arith.constant 0 : i32
    %c0_i32_0 = arith.constant 0 : i32
    return %arg0, %c0_i32, %arg1 : i32, i32, i32
  }
  func.func @transform_1(%arg0: i32, %arg1: i32) -> (i32, i32) {
    %c0_i32 = arith.constant 0 : i32
    %c0_i32_0 = arith.constant 0 : i32
    %c0_i32_1 = arith.constant 0 : i32
    return %c0_i32, %c0_i32_0 : i32, i32
  }
  func.func @transform_2(%arg0: i32, %arg1: i32) -> (i32, i32) {
    %c0_i32 = arith.constant 0 : i32
    %c0_i32_0 = arith.constant 0 : i32
    %c0_i32_1 = arith.constant 0 : i32
    return %c0_i32, %c0_i32_0 : i32, i32
  }
  func.func @transform_3(%arg0: i32, %arg1: i32) -> (i32, i32) {
    %c0_i32 = arith.constant 0 : i32
    %c0_i32_0 = arith.constant 0 : i32
    %c0_i32_1 = arith.constant 0 : i32
    return %c0_i32, %c0_i32_0 : i32, i32
  }
  func.func @transform_4(%arg0: i32, %arg1: i32) -> (i32, i32) {
    %c0_i32 = arith.constant 0 : i32
    %c0_i32_0 = arith.constant 0 : i32
    %c0_i32_1 = arith.constant 0 : i32
    return %c0_i32, %c0_i32_0 : i32, i32
  }
  func.func @transform_5(%arg0: i32, %arg1: i32) -> (i32, i32, i32) {
    %c0_i32 = arith.constant 0 : i32
    %c0_i32_0 = arith.constant 0 : i32
    %c0_i32_1 = arith.constant 0 : i32
    return %arg0, %c0_i32, %c0_i32_0 : i32, i32, i32
  }
}

</mosaic_0001>

<llo_original>
// kernel: tpu_custom_call.1
$region0: #{tpu_custom_call.1}
  #allocation0 [shape = 'u32[]', space=smem, size = 0x4, offset = 0x4, fixed_abs, tag = 'smem constant byte address 0x4 - core index']
  #allocation1 [shape = 'u32[72,128]{1,0:T(1,128)}', space=vmem, size = 0x9000, scoped, tag = 'internal scratch']
  #allocation2 [shape = 'f32[1,32]{1,0:T(1,128)}', space=vmem, size = 0x200, scoped, tag = 'scratch operand']
  %s0 = inlined_call_operand.hbm [shape: f32[2,32,256], index: 0, kind: input, shape index: {}]
  %s1 = inlined_call_operand.vmem [shape: f32[32,2], index: 1, kind: input, shape index: {}]
  %s2 = inlined_call_operand.vmem [shape: f32[1,2], index: 2, kind: input, shape index: {}]
  %s3 = inlined_call_operand.vmem [shape: f32[2,32], index: 3, kind: input, shape index: {}]
  %s4 = inlined_call_operand.vmem [shape: f32[1,32], index: 4, kind: input, shape index: {}]
  %s5 = inlined_call_operand.hbm [shape: f32[2,1,32], index: 5, kind: output, shape index: {}]
  %s6 = sld [smem:[#allocation0]]
  $region65: #{tpu_custom_call.1} parent=0
    _
  %s8 = ssub.s32 1, %s6
  %s9 = scalar_select 0, %s8, %s6
  $region1: #{tpu_custom_call.1} parent=0
    #allocation3 [shape = 'u8[32768]{0}', space=vmem, size = 0x8000, scoped, tag = 'input window, operand 0']
    #allocation4 [shape = 's32[2]{0}', space=sflag, size = 0x8, scoped, tag = 'scoped memory for tpu_custom_call.1']
    #allocation5 [shape = 's32[2]{0}', space=sflag, size = 0x8, scoped, tag = 'scoped memory for tpu_custom_call.1']
    #allocation6 [shape = 'u8[1024]{0}', space=vmem, size = 0x400, scoped, tag = 'output window, operand 0']
    %10 = vsyncpa [#allocation4], 0
    %s11 = scalar_lea.sflag [#allocation4], 1
    %12 = vsyncpa %s11, 0
    %13 = vsyncpa [#allocation5], 0
    %s14 = scalar_lea.sflag [#allocation5], 1
    %15 = vsyncpa %s14, 0
    loop: start=0, step=1, limit=6
    $region2: #{tpu_custom_call.1} parent=1 // loop_pre_header
      _
    $region3: #{tpu_custom_call.1} parent=1 // loop_header
      %s17 = sphi 0, %s21
      %p18 = scmp.ge.s32.totalorder %s17, 6
      %s24 = sphi 0, %s36
      %s25 = sphi 0, %s32
      %s26 = sphi 0, %s24
      %s27 = sphi 0, %s25
      %s28 = sphi 0, %s26
      %s29 = sphi 0, %s27
      %s41 = sphi 0, %s43
      %s44 = sphi 0, %s41
      %s45 = sphi 0, %s44
      %s61 = sphi 0, %s45
      %s65 = sphi 0, %s65
      %s67 = sphi 0, %s65
      %s68 = sphi 0, %s67
      %s82 = sphi 0, %s68
      %s86 = sphi 0, %s86
      %s88 = sphi 0, %s86
      %s89 = sphi 0, %s88
      %s103 = sphi 0, %s89
      %s107 = sphi 0, %s107
      %s109 = sphi 0, %s107
      %s110 = sphi 0, %s109
      %s124 = sphi 0, %s110
      %s128 = sphi 0, %s128
      %s130 = sphi 0, %s128
      %s131 = sphi 0, %s130
      %s145 = sphi 0, %s131
      %s151 = sphi 0, %s153
      %s154 = sphi 0, %s151
      %s155 = sphi 0, %s154
      %s171 = sphi 0, %s155
    $region4: #{tpu_custom_call.1} parent=1 // loop_header_branch
      %20 = sbr.rel (%p18) target = $region8
    $region5: #{tpu_custom_call.1} parent=1 // loop_body
      %s22 = ssub.s32 %s17, 1
      %s23 = ssub.s32 %s17, 2
      %s30 = sadd.s32 1, %s25
      %p31 = scmp.ge.s32.totalorder %s30, 2
      %s32 = scalar_select %p31, 0, %s30
      %s33 = sadd.s32 1, %s24
      %s34 = scalar_select %p31, %s33, %s24
      %p35 = scmp.ge.s32.totalorder %s34, 2
      %s36 = scalar_select %p35, 0, %s34
      %s37 = ssub.s32 %s24, %s36
      %s38 = ssub.s32 %s25, %s32
      %s39 = sor.u32 %s37, %s38
      %p40 = scmp.eq.s32.totalorder %s39, 0
      %s42 = sadd.s32 %s41, 1
      %s43 = scalar_select %p40, %s41, %s42
      %p46 = pneg %p40
      %p47 = scmp.eq.s32.totalorder %s17, 3
      %p48 = por %p46, %p47
      %p49 = scmp.ne.s32.totalorder %s41, %s44
      %p50 = scmp.eq.s32.totalorder %s17, 0
      %p51 = por %p49, %p50
      %p52 = scmp.ne.s32.totalorder %s41, %s44
      %p53 = scmp.eq.s32.totalorder %s22, 3
      %p54 = por %p52, %p53
      %p55 = scmp.ne.s32.totalorder %s44, %s45
      %p56 = scmp.eq.s32.totalorder %s22, 0
      %p57 = por %p55, %p56
      %p58 = scmp.ne.s32.totalorder %s44, %s45
      %p59 = scmp.eq.s32.totalorder %s23, 3
      %p60 = por %p58, %p59
      %p62 = scmp.ne.s32.totalorder %s45, %s61
      %p63 = scmp.eq.s32.totalorder %s23, 0
      %p64 = por %p62, %p63
      %s66 = sadd.s32 %s65, 1
      %p69 = scmp.eq.s32.totalorder %s17, 3
      %p70 = scmp.ne.s32.totalorder %s65, %s67
      %p71 = scmp.eq.s32.totalorder %s17, 0
      %p72 = por %p70, %p71
      %p73 = scmp.ne.s32.totalorder %s65, %s67
      %p74 = scmp.eq.s32.totalorder %s22, 3
      %p75 = por %p73, %p74
      %p76 = scmp.ne.s32.totalorder %s67, %s68
      %p77 = scmp.eq.s32.totalorder %s22, 0
      %p78 = por %p76, %p77
      %p79 = scmp.ne.s32.totalorder %s67, %s68
      %p80 = scmp.eq.s32.totalorder %s23, 3
      %p81 = por %p79, %p80
      %p83 = scmp.ne.s32.totalorder %s68, %s82
      %p84 = scmp.eq.s32.totalorder %s23, 0
      %p85 = por %p83, %p84
      %s87 = sadd.s32 %s86, 1
      %p90 = scmp.eq.s32.totalorder %s17, 3
      %p91 = scmp.ne.s32.totalorder %s86, %s88
      %p92 = scmp.eq.s32.totalorder %s17, 0
      %p93 = por %p91, %p92
      %p94 = scmp.ne.s32.totalorder %s86, %s88
      %p95 = scmp.eq.s32.totalorder %s22, 3
      %p96 = por %p94, %p95
      %p97 = scmp.ne.s32.totalorder %s88, %s89
      %p98 = scmp.eq.s32.totalorder %s22, 0
      %p99 = por %p97, %p98
      %p100 = scmp.ne.s32.totalorder %s88, %s89
      %p101 = scmp.eq.s32.totalorder %s23, 3
      %p102 = por %p100, %p101
      %p104 = scmp.ne.s32.totalorder %s89, %s103
      %p105 = scmp.eq.s32.totalorder %s23, 0
      %p106 = por %p104, %p105
      %s108 = sadd.s32 %s107, 1
      %p111 = scmp.eq.s32.totalorder %s17, 3
      %p112 = scmp.ne.s32.totalorder %s107, %s109
      %p113 = scmp.eq.s32.totalorder %s17, 0
      %p114 = por %p112, %p113
      %p115 = scmp.ne.s32.totalorder %s107, %s109
      %p116 = scmp.eq.s32.totalorder %s22, 3
      %p117 = por %p115, %p116
      %p118 = scmp.ne.s32.totalorder %s109, %s110
      %p119 = scmp.eq.s32.totalorder %s22, 0
      %p120 = por %p118, %p119
      %p121 = scmp.ne.s32.totalorder %s109, %s110
      %p122 = scmp.eq.s32.totalorder %s23, 3
      %p123 = por %p121, %p122
      %p125 = scmp.ne.s32.totalorder %s110, %s124
      %p126 = scmp.eq.s32.totalorder %s23, 0
      %p127 = por %p125, %p126
      %s129 = sadd.s32 %s128, 1
      %p132 = scmp.eq.s32.totalorder %s17, 3
      %p133 = scmp.ne.s32.totalorder %s128, %s130
      %p134 = scmp.eq.s32.totalorder %s17, 0
      %p135 = por %p133, %p134
      %p136 = scmp.ne.s32.totalorder %s128, %s130
      %p137 = scmp.eq.s32.totalorder %s22, 3
      %p138 = por %p136, %p137
      %p139 = scmp.ne.s32.totalorder %s130, %s131
      %p140 = scmp.eq.s32.totalorder %s22, 0
      %p141 = por %p139, %p140
      %p142 = scmp.ne.s32.totalorder %s130, %s131
      %p143 = scmp.eq.s32.totalorder %s23, 3
      %p144 = por %p142, %p143
      %p146 = scmp.ne.s32.totalorder %s131, %s145
      %p147 = scmp.eq.s32.totalorder %s23, 0
      %p148 = por %p146, %p147
      %s149 = ssub.s32 %s24, %s36
      %p150 = scmp.eq.s32.totalorder %s149, 0
      %s152 = sadd.s32 %s151, 1
      %s153 = scalar_select %p150, %s151, %s152
      %p156 = pneg %p150
      %p157 = scmp.eq.s32.totalorder %s17, 3
      %p158 = por %p156, %p157
      %p159 = scmp.ne.s32.totalorder %s151, %s154
      %p160 = scmp.eq.s32.totalorder %s17, 0
      %p161 = por %p159, %p160
      %p162 = scmp.ne.s32.totalorder %s151, %s154
      %p163 = scmp.eq.s32.totalorder %s22, 3
      %p164 = por %p162, %p163
      %p165 = scmp.ne.s32.totalorder %s154, %s155
      %p166 = scmp.eq.s32.totalorder %s22, 0
      %p167 = por %p165, %p166
      %p168 = scmp.ne.s32.totalorder %s154, %s155
      %p169 = scmp.eq.s32.totalorder %s23, 3
      %p170 = por %p168, %p169
      %p172 = scmp.ne.s32.totalorder %s155, %s171
      %p173 = scmp.eq.s32.totalorder %s23, 0
      %p174 = por %p172, %p173
      %p175 = scmp.le.s32.totalorder 1, %s17
      %p176 = scmp.lt.s32.totalorder %s17, 5
      %p177 = pnand %p175, %p176
      %p178 = pneg %p177
      // Predicated region
      $region9: #{tpu_custom_call.1} parent=5 // pred_check
        _
      $region10: #{tpu_custom_call.1} parent=5 // pred_check_branch
        %180 = sbr.rel (%p177) target = $region12
      $region11: #{tpu_custom_call.1} parent=5 // pred_region
        %s181 = ssub.s32 %s17, 1
        // Predicated region
        $region13: #{tpu_custom_call.1} parent=11 // pred_check
          %p182 = pneg %p78
        $region14: #{tpu_custom_call.1} parent=11 // pred_check_branch
          %184 = sbr.rel (%p182) target = $region16
        $region15: #{tpu_custom_call.1} parent=11 // pred_region
          _
        $region16: #{tpu_custom_call.1} parent=11 // pred_fallthru
          _
        // Predicated region
        $region17: #{tpu_custom_call.1} parent=11 // pred_check
          %p185 = pneg %p99
        $region18: #{tpu_custom_call.1} parent=11 // pred_check_branch
          %187 = sbr.rel (%p185) target = $region20
        $region19: #{tpu_custom_call.1} parent=11 // pred_region
          _
        $region20: #{tpu_custom_call.1} parent=11 // pred_fallthru
          _
        // Predicated region
        $region21: #{tpu_custom_call.1} parent=11 // pred_check
          %p188 = pneg %p120
        $region22: #{tpu_custom_call.1} parent=11 // pred_check_branch
          %190 = sbr.rel (%p188) target = $region24
        $region23: #{tpu_custom_call.1} parent=11 // pred_region
          _
        $region24: #{tpu_custom_call.1} parent=11 // pred_fallthru
          _
        // Predicated region
        $region25: #{tpu_custom_call.1} parent=11 // pred_check
          %p191 = pneg %p141
        $region26: #{tpu_custom_call.1} parent=11 // pred_check_branch
          %193 = sbr.rel (%p191) target = $region28
        $region27: #{tpu_custom_call.1} parent=11 // pred_region
          _
        $region28: #{tpu_custom_call.1} parent=11 // pred_fallthru
          _
      $region12: #{tpu_custom_call.1} parent=5 // pred_fallthru
        _
      %p194 = scmp.lt.s32.totalorder %s17, 4
      // Predicated region
      $region29: #{tpu_custom_call.1} parent=5 // pred_check
        %p195 = pneg %p194
      $region30: #{tpu_custom_call.1} parent=5 // pred_check_branch
        %197 = sbr.rel (%p195) target = $region32
      $region31: #{tpu_custom_call.1} parent=5 // pred_region
        // Predicated region
        $region33: #{tpu_custom_call.1} parent=31 // pred_check
          %p198 = pneg %p51
        $region34: #{tpu_custom_call.1} parent=31 // pred_check_branch
          %200 = sbr.rel (%p198) target = $region36
        $region35: #{tpu_custom_call.1} parent=31 // pred_region
          %s201 = sand.u32 %s41, 1
          %s202 = scalar_lea.sflag [#allocation4], %s201
          %s203 = sand.u32 %s41, 1
          %s204 = smul.addr %s203, 32
          %s205 = scalar_lea.vmem [#allocation3], %s204
          %207 = vsyncadd %s202, 0
          %s208 = smul.addr %s24, 8
          %s209 = sadd.s32 %s25, %s208
          %s210 = smul.addr %s209, 8
          %s211 = scalar_lea.hbm %s0, %s210
          %s212 = sshll.u32 %s211, 4
          %s213 = int_to_ptr.hbm [resolvable:$true] %s212
          %s214 = sshll.u32 %s205, 4
          %s215 = int_to_ptr.vmem [resolvable:$true] %s214
          %220 = dma.hbm_to_vmem [thread:$0]  %s213, 512, %s215, %s202, 256, 128, 8
        $region36: #{tpu_custom_call.1} parent=31 // pred_fallthru
          _
      $region32: #{tpu_custom_call.1} parent=5 // pred_fallthru
        _
      %p221 = scmp.le.s32.totalorder 1, %s17
      %p222 = scmp.lt.s32.totalorder %s17, 5
      %p223 = pnand %p221, %p222
      %p224 = pneg %p223
      // Predicated region
      $region37: #{tpu_custom_call.1} parent=5 // pred_check
        _
      $region38: #{tpu_custom_call.1} parent=5 // pred_check_branch
        %226 = sbr.rel (%p223) target = $region40
      $region39: #{tpu_custom_call.1} parent=5 // pred_region
        %s227 = ssub.s32 %s17, 1
        %s228 = sand.u32 %s44, 1
        %s229 = scalar_lea.sflag [#allocation4], %s228
        %s230 = sand.u32 %s44, 1
        %s231 = smul.addr %s230, 32
        %s232 = scalar_lea.vmem [#allocation3], %s231
        // Predicated region
        $region41: #{tpu_custom_call.1} parent=39 // pred_check
          %p233 = pneg %p57
        $region42: #{tpu_custom_call.1} parent=39 // pred_check_branch
          %235 = sbr.rel (%p233) target = $region44
        $region43: #{tpu_custom_call.1} parent=39 // pred_region
          %237 = dma.done %s229, 512
        $region44: #{tpu_custom_call.1} parent=39 // pred_fallthru
          _
        %s238 = sand.u32 %s44, 1
        %s239 = scalar_lea.sflag [#allocation4], %s238
        %s240 = sand.u32 %s44, 1
        %s241 = smul.addr %s240, 32
        %s242 = scalar_lea.vmem [#allocation3], %s241
        %p243 = pneg %p57
        %p244 = pneg %p54
        %p245 = pneg %p78
        %p246 = pneg %p75
        %p247 = pneg %p99
        %p248 = pneg %p96
        %p249 = pneg %p120
        %p250 = pneg %p117
        %p251 = pneg %p141
        %p252 = pneg %p138
        %p253 = pneg %p167
        %p254 = pneg %p164
        %s255 = sand.u32 %s154, 1
        %s256 = scalar_lea.sflag [#allocation5], %s255
        %s257 = sand.u32 %s154, 1
        %s258 = scalar_lea.vmem [#allocation6], %s257
        %p259 = scmp.eq.s32.totalorder %s27, 0
        // Predicated region
        $region45: #{tpu_custom_call.1} parent=39 // pred_check
          %p260 = pneg %p259
        $region46: #{tpu_custom_call.1} parent=39 // pred_check_branch
          %262 = sbr.rel (%p260) target = $region48
        $region47: #{tpu_custom_call.1} parent=39 // pred_region
          %vm263 = vcmask 253952
          %264 = vst.msk [vmem:[#allocation2] sm:$0x1] %vm263, 0.0
        $region48: #{tpu_custom_call.1} parent=39 // pred_fallthru
          _
        %v265 = vld [vmem:[%s232] sm:$0xff]
        %v266 = vld [vmem:[%s232 + $0x8] sm:$0xff]
        %v267 = vld [vmem:[%s232 + $0x10] sm:$0xff]
        %v268 = vld [vmem:[%s232 + $0x18] sm:$0xff]
        %v269 = vld [vmem:[#allocation2] sm:$0x1]
        %270 = vadd.xlane.f32.xlu0 %v265
        %v271 = vpop.xlane.xlu0 %270
        %272 = vadd.xlane.f32.xlu0 %v266
        %v273 = vpop.xlane.xlu0 %272
        %274 = vadd.xlane.f32.xlu0 %v267
        %v275 = vpop.xlane.xlu0 %274
        %276 = vadd.xlane.f32.xlu0 %v268
        %v277 = vpop.xlane.xlu0 %276
        %v282 = vperm.slane %v271, 0
        %v283 = vperm.slane %v271, 1
        %v284 = vperm.slane %v271, 2
        %v285 = vperm.slane %v271, 3
        %v286 = vperm.slane %v271, 4
        %v287 = vperm.slane %v271, 5
        %v288 = vperm.slane %v271, 6
        %v289 = vperm.slane %v271, 7
        %v290 = vperm.slane %v273, 0
        %v291 = vperm.slane %v273, 1
        %v292 = vperm.slane %v273, 2
        %v293 = vperm.slane %v273, 3
        %v294 = vperm.slane %v273, 4
        %v295 = vperm.slane %v273, 5
        %v296 = vperm.slane %v273, 6
        %v297 = vperm.slane %v273, 7
        %v298 = vperm.slane %v275, 0
        %v299 = vperm.slane %v275, 1
        %v300 = vperm.slane %v275, 2
        %v301 = vperm.slane %v275, 3
        %v302 = vperm.slane %v275, 4
        %v303 = vperm.slane %v275, 5
        %v304 = vperm.slane %v275, 6
        %v305 = vperm.slane %v275, 7
        %v306 = vperm.slane %v277, 0
        %v307 = vperm.slane %v277, 1
        %v308 = vperm.slane %v277, 2
        %v309 = vperm.slane %v277, 3
        %v310 = vperm.slane %v277, 4
        %v311 = vperm.slane %v277, 5
        %v312 = vperm.slane %v277, 6
        %v313 = vperm.slane %v277, 7
        %314 = vst [vmem:[#allocation1] ss:$9 sm:$0xff] %v282
        %s315 = scalar_lea.vmem [#allocation1], 1
        %316 = vst [vmem:[%s315] ss:$9 sm:$0xff] %v283
        %s317 = scalar_lea.vmem [#allocation1], 2
        %318 = vst [vmem:[%s317] ss:$9 sm:$0xff] %v284
        %s319 = scalar_lea.vmem [#allocation1], 3
        %320 = vst [vmem:[%s319] ss:$9 sm:$0xff] %v285
        %s321 = scalar_lea.vmem [#allocation1], 4
        %322 = vst [vmem:[%s321] ss:$9 sm:$0xff] %v286
        %s323 = scalar_lea.vmem [#allocation1], 5
        %324 = vst [vmem:[%s323] ss:$9 sm:$0xff] %v287
        %s325 = scalar_lea.vmem [#allocation1], 6
        %326 = vst [vmem:[%s325] ss:$9 sm:$0xff] %v288
        %s327 = scalar_lea.vmem [#allocation1], 7
        %328 = vst [vmem:[%s327] ss:$9 sm:$0xff] %v289
        %v329 = vld [vmem:[#allocation1] sm:$0xff]
        %330 = vst [vmem:[#allocation1] ss:$9 sm:$0xff] %v290
        %331 = vst [vmem:[%s315] ss:$9 sm:$0xff] %v291
        %332 = vst [vmem:[%s317] ss:$9 sm:$0xff] %v292
        %333 = vst [vmem:[%s319] ss:$9 sm:$0xff] %v293
        %334 = vst [vmem:[%s321] ss:$9 sm:$0xff] %v294
        %335 = vst [vmem:[%s323] ss:$9 sm:$0xff] %v295
        %336 = vst [vmem:[%s325] ss:$9 sm:$0xff] %v296
        %337 = vst [vmem:[%s327] ss:$9 sm:$0xff] %v297
        %v338 = vld [vmem:[#allocation1] sm:$0xff]
        %339 = vst [vmem:[#allocation1] ss:$9 sm:$0xff] %v298
        %340 = vst [vmem:[%s315] ss:$9 sm:$0xff] %v299
        %341 = vst [vmem:[%s317] ss:$9 sm:$0xff] %v300
        %342 = vst [vmem:[%s319] ss:$9 sm:$0xff] %v301
        %343 = vst [vmem:[%s321] ss:$9 sm:$0xff] %v302
        %344 = vst [vmem:[%s323] ss:$9 sm:$0xff] %v303
        %345 = vst [vmem:[%s325] ss:$9 sm:$0xff] %v304
        %346 = vst [vmem:[%s327] ss:$9 sm:$0xff] %v305
        %v347 = vld [vmem:[#allocation1] sm:$0xff]
        %348 = vst [vmem:[#allocation1] ss:$9 sm:$0xff] %v306
        %349 = vst [vmem:[%s315] ss:$9 sm:$0xff] %v307
        %350 = vst [vmem:[%s317] ss:$9 sm:$0xff] %v308
        %351 = vst [vmem:[%s319] ss:$9 sm:$0xff] %v309
        %352 = vst [vmem:[%s321] ss:$9 sm:$0xff] %v310
        %353 = vst [vmem:[%s323] ss:$9 sm:$0xff] %v311
        %354 = vst [vmem:[%s325] ss:$9 sm:$0xff] %v312
        %355 = vst [vmem:[%s327] ss:$9 sm:$0xff] %v313
        %v356 = vld [vmem:[#allocation1] sm:$0xff]
        %357 = vset.pattern.permute.xlu0 0
        %358 = vperm.xlu0 %357, %v329
        %v359 = vpop.permute.xlu0 %358
        %360 = vset.pattern.permute.xlu0 0
        %361 = vperm.xlu0 %360, %v338
        %v362 = vpop.permute.xlu0 %361
        %363 = vset.pattern.permute.xlu0 0
        %364 = vperm.xlu0 %363, %v347
        %v365 = vpop.permute.xlu0 %364
        %366 = vset.pattern.permute.xlu0 0
        %367 = vperm.xlu0 %366, %v356
        %v368 = vpop.permute.xlu0 %367
        %v369 = vlaneseq
        %v370 = vand.u32 %v369, 127
        %v371 = vperm.slane %v359, %v370
        %v372 = vadd.s32 %v370, 4294967288
        %v373 = vperm.slane %v362, %v372
        %vm374 = vcmask 130112
        %v375 = vsel %vm374, %v373, %v371
        %v376 = vadd.s32 %v370, 4294967280
        %v377 = vperm.slane %v365, %v376
        %vm378 = vcmask 195712
        %v379 = vsel %vm378, %v377, %v375
        %v380 = vadd.s32 %v370, 4294967272
        %v381 = vperm.slane %v368, %v380
        %vm382 = vcmask 261312
        %v383 = vsel %vm382, %v381, %v379
        %v385 = vadd.f32 %v269, %v383
        %vm386 = vcmask 253952
        %387 = vst.msk [vmem:[#allocation2] sm:$0x1] %vm386, %v385
        %p388 = scmp.eq.s32.totalorder %s27, 1
        // Predicated region
        $region49: #{tpu_custom_call.1} parent=39 // pred_check
          %p389 = pneg %p388
        $region50: #{tpu_custom_call.1} parent=39 // pred_check_branch
          %391 = sbr.rel (%p389) target = $region52
        $region51: #{tpu_custom_call.1} parent=39 // pred_region
          %v392 = vld [vmem:[#allocation2] sm:$0x1]
          %v393 = vmul.f32 %v392, 0.00390625
          %v394 = vld [vmem:[%s1] sm:$0xff]
          %v395 = vld [vmem:[%s1 + $0x8] sm:$0xff]
          %v396 = vld [vmem:[%s1 + $0x10] sm:$0xff]
          %v397 = vld [vmem:[%s1 + $0x18] sm:$0xff]
          %v398 = vld [vmem:[%s2] sm:$0x1]
          %vm399 = vcmask 261120
          %v401 = vsel %vm399, %v393, 0
          %403 = vmatpush.msra.mxu0 0.0
          %404 = vmatpush.msra.mxu0 0.0
          %405 = vmatpush.msra.mxu0 0.0
          %406 = vmatpush.msra.mxu0 0.0
          %407 = vmatpush.msra.mxu0 0.0
          %408 = vmatpush.msra.mxu0 0.0
          %409 = vmatpush.msra.mxu0 0.0
          %410 = vmatpush.msra.mxu0 0.0
          %411 = vmatpush.msra.mxu0 0.0
          %412 = vmatpush.msra.mxu0 0.0
          %413 = vmatpush.msra.mxu0 0.0
          %414 = vmatpush.msra.mxu0 0.0
          %415 = vmatpush.msra.mxu0 %v397
          %416 = vmatpush.msra.mxu0 %v396
          %417 = vmatpush.msra.mxu0 %v395
          %418 = vmatpush.msra.mxu0 %v394
          %419 = vmatmul.f32.gmra.mxu0 %v401
          %v420 = vpop.f32.mrf.mxu0
          %v421 = vadd.f32 %v398, %v420
          %422 = vdwg.mxu0
          %v423 = vmax.f32 %v421, 0.0
          %v424 = vld [vmem:[%s3] sm:$0x3]
          %v425 = vld [vmem:[%s4] sm:$0x1]
          %vm426 = vcmask 15360
          %v428 = vsel %vm426, %v423, 0
          %vm430 = vcmask 1041408
          %v432 = vsel %vm430, %v424, 0
          %434 = vmatpush.msra.mxu0 0.0
          %435 = vmatpush.msra.mxu0 0.0
          %436 = vmatpush.msra.mxu0 0.0
          %437 = vmatpush.msra.mxu0 0.0
          %438 = vmatpush.msra.mxu0 0.0
          %439 = vmatpush.msra.mxu0 0.0
          %440 = vmatpush.msra.mxu0 0.0
          %441 = vmatpush.msra.mxu0 0.0
          %442 = vmatpush.msra.mxu0 0.0
          %443 = vmatpush.msra.mxu0 0.0
          %444 = vmatpush.msra.mxu0 0.0
          %445 = vmatpush.msra.mxu0 0.0
          %446 = vmatpush.msra.mxu0 0.0
          %447 = vmatpush.msra.mxu0 0.0
          %448 = vmatpush.msra.mxu0 0.0
          %449 = vmatpush.msra.mxu0 %v432
          %450 = vmatmul.f32.gmra.mxu0 %v428
          %v451 = vpop.f32.mrf.mxu0
          %v452 = vadd.f32 %v425, %v451
          %453 = vdwg.mxu0
          %v454 = vxor.u32 %v452, 2147483648
          %v455 = vmul.f32 %v454, 1.442695
          %v456 = vpow.pop %v455
          %v457 = vadd.f32 %v456, 1.0
          %v458 = vrcp.pop %v457
          %v459 = vmul.f32 %v457, %v458
          %v460 = vsub.f32 1.0, %v459
          %v461 = vmul.f32 %v458, %v460
          %v462 = vadd.f32 %v458, %v461
          %vm463 = vweird.f32 %v457
          %vm464 = vweird.f32 %v458
          %vm465 = vmor %vm463, %vm464
          %v466 = vsel %vm465, %v458, %v462
          %v467 = vand.u32 2147483647, %v457
          %vm468 = vcmp.eq.f32.partialorder %v467, 8.507059e+37
          %v469 = vand.u32 %v457, 2147483648
          %v470 = vor.u32 1.1754944e-38, %v469
          %v471 = vsel %vm468, %v470, %v466
          %v472 = vmul.f32 1.0, %v471
          %473 = vst.msk [vmem:[%s258] sm:$0x1] %vm386, %v472
        $region52: #{tpu_custom_call.1} parent=39 // pred_fallthru
          _
        %s474 = sand.u32 %s154, 1
        %s475 = scalar_lea.sflag [#allocation5], %s474
        %s476 = sand.u32 %s154, 1
        %s477 = scalar_lea.vmem [#allocation6], %s476
        // Predicated region
        $region53: #{tpu_custom_call.1} parent=39 // pred_check
          %p478 = pneg %p164
        $region54: #{tpu_custom_call.1} parent=39 // pred_check_branch
          %480 = sbr.rel (%p478) target = $region56
        $region55: #{tpu_custom_call.1} parent=39 // pred_region
          %482 = vsyncadd %s475, 0
          %s483 = scalar_lea.hbm %s5, %s26
          %s485 = sshll.u32 %s477, 4
          %s486 = int_to_ptr.vmem [resolvable:$true] %s485
          %s487 = sshll.u32 %s483, 4
          %s488 = int_to_ptr.hbm [resolvable:$true] %s487
          %490 = dma.vmem_to_hbm [thread:$0]  %s486, 16, %s488, %s475
        $region56: #{tpu_custom_call.1} parent=39 // pred_fallthru
          _
      $region40: #{tpu_custom_call.1} parent=5 // pred_fallthru
        _
      %p491 = scmp.le.s32.totalorder 2, %s17
      // Predicated region
      $region57: #{tpu_custom_call.1} parent=5 // pred_check
        %p492 = pneg %p491
      $region58: #{tpu_custom_call.1} parent=5 // pred_check_branch
        %494 = sbr.rel (%p492) target = $region60
      $region59: #{tpu_custom_call.1} parent=5 // pred_region
        %s495 = ssub.s32 %s17, 2
        // Predicated region
        $region61: #{tpu_custom_call.1} parent=59 // pred_check
          %p496 = pneg %p170
        $region62: #{tpu_custom_call.1} parent=59 // pred_check_branch
          %498 = sbr.rel (%p496) target = $region64
        $region63: #{tpu_custom_call.1} parent=59 // pred_region
          %s499 = sand.u32 %s155, 1
          %s500 = scalar_lea.sflag [#allocation5], %s499
          %s501 = sand.u32 %s155, 1
          %s502 = scalar_lea.vmem [#allocation6], %s501
          %504 = dma.done %s500, 16
        $region64: #{tpu_custom_call.1} parent=59 // pred_fallthru
          _
      $region60: #{tpu_custom_call.1} parent=5 // pred_fallthru
        _
    $region6: #{tpu_custom_call.1} parent=1 // loop_footer
      %s21 = sadd.s32 1, %s17
    $region7: #{tpu_custom_call.1} parent=1 // loop_footer_branch
      %16 = sbr.rel target = $region3
    $region8: #{tpu_custom_call.1} parent=1 // loop_exit
      _
    %505 = vsyncpa [#allocation4], 1
    %s506 = scalar_lea.sflag [#allocation4], 1
    %507 = vsyncpa %s506, 1
    %508 = vsyncpa [#allocation5], 1
    %s509 = scalar_lea.sflag [#allocation5], 1
    %510 = vsyncpa %s509, 1

</llo_original>
